<compile_context>
chip_gen: v6e
topology: v6e:2x2x1
jax: 0.10.0
libtpu: 0.0.40
codegen_flags: <defaults>
</compile_context>

<pallas_src>
import functools

import jax
import jax.numpy as jnp
from jax import lax
from jax.experimental import pallas as pl
from jax.experimental.pallas import tpu as pltpu


def _vmem_budget_bytes() -> int:
    """Per-generation scoped-VMEM budget (v7x: 64 MiB physical, v5e/v6e: 128 MiB)."""
    try:
        cap = int(getattr(pltpu.get_tpu_info(), "vmem_capacity_bytes", 64 << 20))
    except Exception:  # not queryable -> conservative (v7x-safe) default
        cap = 64 << 20
    return min(max(cap // 2, 32 << 20), 64 << 20)


def _pick_d_tile(d: int, hw_pad: int, target: int, vmem_limit: int) -> int:
    """Largest multiple-of-8 D-tile <= target that fits the VMEM budget.

    Budget model (all f32): window double buffer (2*3*td*4 B/plane-row), output double
    buffer (2*td*4), ~10 full-tile temporaries Mosaic materializes (40*td), plus the
    fixed halo rows of the window and some slack."""
    per_plane = 72 * hw_pad
    fixed = 96 * hw_pad + (2 << 20)
    cap = max(8, int((vmem_limit - fixed) // per_plane) // 8 * 8)
    td = max(8, (min(int(target), cap) // 8) * 8)
    return d if d <= td else td


def _jac_loss_kernel(x_hbm, wpos_ref, o_ref, win_buf, sem, *,
                     td, winp, d_total, d_pad, n_b, n_d, last_bt,
                     hn, wn, hw_pad, inv_sd, inv_sh, inv_sw):
    # x_hbm   : (B, 3, d_pad, hw_pad) f32 in HBM (pl.ANY) -- manually DMA'd.
    # wpos_ref: (1, hw_pad) int32, w-coordinate of each flattened column.
    # o_ref   : (td, hw_pad) output loss tile.
    # win_buf : (2, 3, td + 4, hw_pad) VMEM double buffer.  Global plane g of tile dt
    #           lands at buffer row g - dt*td + 2, so the tile always occupies rows
    #           [2, td+2); rows 1 / td+2 act as halo pads at the global D boundaries.
    # sem     : (2,) DMA semaphores.
    b = pl.program_id(0)
    dt = pl.program_id(1)
    step = b * n_d + dt
    slot = step % 2

    def copy_desc(bb, dtile, s):
        # Halo'd window of `winp` planes, start clamped at the global D boundaries; the
        # clamp is absorbed into the DMA destination offset so compute slices stay static.
        st = jnp.clip(dtile * td - 1, 0, d_pad - winp)
        dst_row = 2 - (dtile * td - st)          # 0 / 1 / 2
        return pltpu.make_async_copy(
            x_hbm.at[bb, :, pl.ds(st, winp)],
            win_buf.at[s, :, pl.ds(dst_row, winp)],
            sem.at[s])

    @pl.when(step == 0)
    def _prime():
        # Zero the halo pad rows once: they are only ever read inside select branches
        # that discard them, but finite values there are cheap insurance.
        zero = jnp.zeros((1, hw_pad), dtype=win_buf.dtype)
        for s in range(2):
            for c in range(3):
                win_buf[s, c, pl.ds(1, 1), :] = zero
                win_buf[s, c, pl.ds(td + 2, 1), :] = zero
        copy_desc(b, dt, slot).start()

    # Prefetch the next window (rolling over into the next batch, so no per-batch DMA
    # bubble) BEFORE waiting on the current one: the descriptor's scalar math does not
    # depend on arriving data and keeps scalar work ahead of the wait.
    is_last_dt = dt == n_d - 1
    nb = jnp.where(is_last_dt, b + 1, b)
    ndt = jnp.where(is_last_dt, 0, dt + 1)

    @pl.when(step + 1 < n_b * n_d)
    def _prefetch():
        copy_desc(nb, ndt, 1 - slot).start()

    copy_desc(b, dt, slot).wait()

    # Boundary masks on the flattened H*W lane axis, hoisted out of the per-channel work.
    col = lax.broadcasted_iota(jnp.int32, (1, hw_pad), 1)
    wpos = wpos_ref[...]
    w_first = wpos == 0
    w_last = wpos == wn - 1
    h_first = col < wn
    h_last = col >= (hn - 1) * wn
    gidx = dt * td + lax.broadcasted_iota(jnp.int32, (td, 1), 0)   # global D index
    d_first = gidx == 0
    d_last = gidx == d_total - 1
    # Only the first and the last D-tile contain a global D boundary.
    is_dbound = jnp.logical_or(dt == 0, dt == last_bt)

    def grad_d(u_tp, u_t, u_tm):
        gd = lax.cond(
            is_dbound,
            lambda tp, t, tm: jnp.where(d_first, tp - t,
                              jnp.where(d_last, t - tm, (tp - tm) * 0.5)),
            lambda tp, t, tm: (tp - tm) * 0.5,          # interior tile: plain central diff
            u_tp, u_t, u_tm)
        return gd * inv_sd if inv_sd != 1.0 else gd

    def grad_lane(u_t, shift, first, last, inv_s):
        # fwd/bwd restructure: one VALU subtract; the second difference is an XLU roll of
        # the first.  Wrap-around positions are exactly the boundary rows/cols patched.
        fwd = pltpu.roll(u_t, hw_pad - shift, axis=1) - u_t    # f[+1] - f[0]
        bwd = pltpu.roll(fwd, shift, axis=1)                   # f[0]  - f[-1]
        g = jnp.where(first, fwd, jnp.where(last, bwd, (fwd + bwd) * 0.5))
        return g * inv_s if inv_s != 1.0 else g

    def channel_grads(c):
        uc = win_buf.at[slot, c]                               # (td + 4, hw_pad) view
        u_t = uc[pl.ds(2, td)]                                 # f[d]
        u_tp = uc[pl.ds(3, td)]                                # f[d+1] (pad row at last tile)
        u_tm = uc[pl.ds(1, td)]                                # f[d-1] (pad row at first tile)
        gd = grad_d(u_tp, u_t, u_tm)
        gh = grad_lane(u_t, wn, h_first, h_last, inv_sh)
        gw = grad_lane(u_t, 1, w_first, w_last, inv_sw)
        # add identity on the diagonal: J row c = grad(u_c) + e_c
        if c == 0:
            gd = gd + 1.0
        elif c == 1:
            gh = gh + 1.0
        else:
            gw = gw + 1.0
        return gd, gh, gw

    # Channels 1 and 2 first -> 2x2 cofactors, then channel 0 streams through the
    # expansion (fewer live full-tile intermediates; helps the v5e single store slot).
    a10, a11, a12 = channel_grads(1)
    a20, a21, a22 = channel_grads(2)
    c0 = a11 * a22 - a12 * a21
    c1 = a10 * a22 - a12 * a20
    c2 = a10 * a21 - a11 * a20
    a00, a01, a02 = channel_grads(0)
    det = a00 * c0 - a01 * c1 + a02 * c2

    # NOTE: log(det) is NaN/-inf where det <= 0 (folding) -- same as the PyTorch reference.
    o_ref[...] = jnp.log(det) ** 2


def jacobian_loss(x, spacing=(1.0, 1.0, 1.0), *, d_tile=32):
    """Pallas implementation of Jacobianloss.forward for 3D displacement fields."""
    if x.ndim != 5:
        raise ValueError("Expected a (B, C, D, H, W) displacement field.")
    B, C, Dn, Hn, Wn = x.shape
    if C != 3:
        # TODO(synk): the 2-D (C=2) branch of the PyTorch module is unreachable for its
        # documented input (calculate_jacobian unpacks 5 dims unconditionally); only C=3.
        raise ValueError("This kernel implements the 3D (C=3) displacement case.")
    if Dn < 2 or Hn < 2 or Wn < 2:
        raise ValueError("Each spatial dimension needs at least 2 samples.")

    x = x.astype(jnp.float32)

    hw = Hn * Wn
    hw_pad = -(-hw // 128) * 128                    # lane-dense minor axis (% 128 == 0)

    vmem_limit = _vmem_budget_bytes()
    td = _pick_d_tile(Dn, hw_pad, d_tile, vmem_limit)
    nd = -(-Dn // td)
    d_pad = nd * td                                 # ragged D handled by padding, not td=D
    winp = min(td + 2, d_pad)                       # halo'd window depth
    last_bt = (Dn - 1) // td

    x2 = x.reshape(B, C, Dn, hw)
    if d_pad != Dn or hw_pad != hw:
        x2 = jnp.pad(x2, ((0, 0), (0, 0), (0, d_pad - Dn), (0, hw_pad - hw)))
    wpos = (jnp.arange(hw_pad, dtype=jnp.int32) % Wn).reshape(1, hw_pad)

    kernel = functools.partial(
        _jac_loss_kernel, td=td, winp=winp, d_total=Dn, d_pad=d_pad,
        n_b=B, n_d=nd, last_bt=last_bt, hn=Hn, wn=Wn, hw_pad=hw_pad,
        inv_sd=1.0 / float(spacing[0]), inv_sh=1.0 / float(spacing[1]),
        inv_sw=1.0 / float(spacing[2]))

    out = pl.pallas_call(
        kernel,
        out_shape=jax.ShapeDtypeStruct((B, d_pad, hw_pad), jnp.float32),
        grid=(B, nd),
        in_specs=[
            pl.BlockSpec(memory_space=pl.ANY),             # x stays in HBM; manual DMA
            pl.BlockSpec((1, hw_pad), lambda b, d: (0, 0)),
        ],
        out_specs=pl.BlockSpec((None, td, hw_pad), lambda b, d: (b, d, 0)),
        scratch_shapes=[
            pltpu.VMEM((2, 3, td + 4, hw_pad), jnp.float32),  # double-buffered halo window
            pltpu.SemaphoreType.DMA((2,)),
        ],
        # Both axes "arbitrary": the rolling prefetch chain crosses batch boundaries, so
        # the whole grid must run sequentially on one core.
        compiler_params=pltpu.CompilerParams(
            dimension_semantics=("arbitrary", "arbitrary"),
            vmem_limit_bytes=vmem_limit),
    )(x2, wpos)

    out = out[:, :Dn, :hw]
    return out.reshape(B, Dn, Hn, Wn)


# ---------------- pure-JAX reference (mirrors the PyTorch code) ----------------

def _gradient_ref(f, axis, h):
    n = f.shape[axis]
    c = (lax.slice_in_dim(f, 2, n, axis=axis)
         - lax.slice_in_dim(f, 0, n - 2, axis=axis)) / (2.0 * h)
    lo = (lax.slice_in_dim(f, 1, 2, axis=axis)
          - lax.slice_in_dim(f, 0, 1, axis=axis)) / h
    hi = (lax.slice_in_dim(f, n - 1, n, axis=axis)
          - lax.slice_in_dim(f, n - 2, n - 1, axis=axis)) / h
    return jnp.concatenate([lo, c, hi], axis=axis)


def jacobian_loss_ref(x, spacing=(1.0, 1.0, 1.0)):
    B, C, Dn, Hn, Wn = x.shape
    outs = []
    for b in range(B):
        grads = [[_gradient_ref(x[b, i], j, float(spacing[j])) for j in range(C)]
                 for i in range(C)]
        J = jnp.stack(
            [jnp.stack([grads[i][j] + (1.0 if i == j else 0.0) for j in range(C)],
                       axis=-1) for i in range(C)],
            axis=-1)
        outs.append(jnp.log(jnp.linalg.det(J)) ** 2)
    return jnp.stack(outs)


if __name__ == "__main__":
    key = jax.random.PRNGKey(0)
    k1, k2, k3 = jax.random.split(key, 3)

    # Case 1: multi D-tile path (cross-batch rolling prefetch, boundary-cond branches).
    B, C, D, H, W = 2, 3, 16, 8, 16
    # small displacements so det(J) stays positive (log well defined)
    x1 = 0.03 * jax.random.normal(k1, (B, C, D, H, W), dtype=jnp.float32)
    out1 = jax.block_until_ready(jacobian_loss(x1, (1.0, 1.0, 1.0), d_tile=8))
    ref1 = jacobian_loss_ref(x1, (1.0, 1.0, 1.0))
    assert out1.shape == (B, D, H, W) and out1.dtype == jnp.float32
    err1 = float(jnp.max(jnp.abs(out1 - ref1)))
    assert err1 < 1e-4, f"tiled-path max abs error {err1}"

    # Case 2: single-window path (whole D in one tile) + non-unit spacing.
    sp2 = (2.0, 1.5, 0.5)
    x2 = 0.03 * jax.random.normal(k2, (1, 3, 4, 8, 16), dtype=jnp.float32)
    out2 = jax.block_until_ready(jacobian_loss(x2, sp2))
    ref2 = jacobian_loss_ref(x2, sp2)
    err2 = float(jnp.max(jnp.abs(out2 - ref2)))
    assert err2 < 1e-4, f"single-window max abs error {err2}"

    # Case 3: ragged D (padded to a tile multiple) + non-128 H*W lane padding + bf16 input.
    x3 = (0.03 * jax.random.normal(k3, (1, 3, 12, 8, 12), dtype=jnp.float32)
          ).astype(jnp.bfloat16)
    out3 = jax.block_until_ready(jacobian_loss(x3, (1.0, 1.0, 1.0), d_tile=8))
    ref3 = jacobian_loss_ref(x3.astype(jnp.float32), (1.0, 1.0, 1.0))
    err3 = float(jnp.max(jnp.abs(out3 - ref3)))
    assert err3 < 1e-4, f"padded-shape max abs error {err3}"

    print("KERNEL_OK")
</pallas_src>

<mosaic_0001>
module attributes {stable_mosaic.version = 11 : i64} {
  func.func @_jac_loss_kernel(%arg0: i32, %arg1: i32, %arg2: memref<2x3x16x128xf32, #tpu.memory_space<any>>, %arg3: memref<1x128xi32, #tpu.memory_space<vmem>>, %arg4: memref<1x8x128xf32, #tpu.memory_space<vmem>>, %arg5: memref<2x3x12x128xf32, #tpu.memory_space<vmem>>, %arg6: memref<2x!tpu.dma_semaphore, #tpu.memory_space<semaphore_mem>>) attributes {dimension_semantics = [#tpu.dimension_semantics<arbitrary>, #tpu.dimension_semantics<arbitrary>], iteration_bounds = array<i64: 2, 2>, scalar_prefetch = 0 : i64, scratch_operands = 2 : i64, tpu.core_type = #tpu.core_type<tc>, window_params = [{}, {pipeline_mode = #tpu.pipeline_mode<synchronous>, transform_indices = @transform_1, window_bounds = array<i64: 1, 128>}, {transform_indices = @transform_2, window_bounds = array<i64: 1, 8, 128>}]} {
    %c2_i32 = arith.constant 2 : i32
    %0 = arith.muli %arg0, %c2_i32 : i32
    %1 = arith.addi %0, %arg1 : i32
    %c2_i32_0 = arith.constant 2 : i32
    %c0_i32 = arith.constant 0 : i32
    %2 = arith.cmpi eq, %c2_i32_0, %c0_i32 : i32
    %c1_i32 = arith.constant 1 : i32
    %3 = arith.select %2, %c1_i32, %c2_i32_0 : i32
    %4 = arith.remsi %1, %3 : i32
    %c0_i32_1 = arith.constant 0 : i32
    %5 = arith.cmpi ne, %4, %c0_i32_1 : i32
    %c0_i32_2 = arith.constant 0 : i32
    %6 = arith.cmpi slt, %4, %c0_i32_2 : i32
    %c0_i32_3 = arith.constant 0 : i32
    %7 = arith.cmpi slt, %3, %c0_i32_3 : i32
    %8 = arith.xori %6, %7 : i1
    %9 = arith.andi %8, %5 : i1
    %10 = arith.addi %4, %3 : i32
    %11 = arith.select %9, %10, %4 : i32
    %c0_i32_4 = arith.constant 0 : i32
    %12 = arith.cmpi eq, %1, %c0_i32_4 : i32
    %13 = arith.extui %12 : i1 to i32
    %c0_i32_5 = arith.constant 0 : i32
    %14 = arith.cmpi ne, %13, %c0_i32_5 : i32
    scf.if %14 {
      %cst_94 = arith.constant 0.000000e+00 : f32
      %191 = vector.broadcast %cst_94 : f32 to vector<1x128xf32>
      %c0_95 = arith.constant 0 : index
      %c0_96 = arith.constant 0 : index
      %c1_97 = arith.constant 1 : index
      %c0_98 = arith.constant 0 : index
      %192 = vector.load %arg5[%c0_95, %c0_96, %c1_97, %c0_98] : memref<2x3x12x128xf32, #tpu.memory_space<vmem>>, vector<1x1x1x128xf32>
      %193 = vector.shape_cast %192 : vector<1x1x1x128xf32> to vector<1x128xf32>
      %194 = vector.shape_cast %191 : vector<1x128xf32> to vector<1x1x1x128xf32>
      tpu.vector_store %arg5[%c0_95, %c0_96, %c1_97, %c0_98], %194 {strides = array<i32>} : memref<2x3x12x128xf32, #tpu.memory_space<vmem>>, vector<1x1x1x128xf32>,
      %c0_99 = arith.constant 0 : index
      %c0_100 = arith.constant 0 : index
      %c10 = arith.constant 10 : index
      %c0_101 = arith.constant 0 : index
      %195 = vector.load %arg5[%c0_99, %c0_100, %c10, %c0_101] : memref<2x3x12x128xf32, #tpu.memory_space<vmem>>, vector<1x1x1x128xf32>
      %196 = vector.shape_cast %195 : vector<1x1x1x128xf32> to vector<1x128xf32>
      %197 = vector.shape_cast %191 : vector<1x128xf32> to vector<1x1x1x128xf32>
      tpu.vector_store %arg5[%c0_99, %c0_100, %c10, %c0_101], %197 {strides = array<i32>} : memref<2x3x12x128xf32, #tpu.memory_space<vmem>>, vector<1x1x1x128xf32>,
      %c0_102 = arith.constant 0 : index
      %c1_103 = arith.constant 1 : index
      %c1_104 = arith.constant 1 : index
      %c0_105 = arith.constant 0 : index
      %198 = vector.load %arg5[%c0_102, %c1_103, %c1_104, %c0_105] : memref<2x3x12x128xf32, #tpu.memory_space<vmem>>, vector<1x1x1x128xf32>
      %199 = vector.shape_cast %198 : vector<1x1x1x128xf32> to vector<1x128xf32>
      %200 = vector.shape_cast %191 : vector<1x128xf32> to vector<1x1x1x128xf32>
      tpu.vector_store %arg5[%c0_102, %c1_103, %c1_104, %c0_105], %200 {strides = array<i32>} : memref<2x3x12x128xf32, #tpu.memory_space<vmem>>, vector<1x1x1x128xf32>,
      %c0_106 = arith.constant 0 : index
      %c1_107 = arith.constant 1 : index
      %c10_108 = arith.constant 10 : index
      %c0_109 = arith.constant 0 : index
      %201 = vector.load %arg5[%c0_106, %c1_107, %c10_108, %c0_109] : memref<2x3x12x128xf32, #tpu.memory_space<vmem>>, vector<1x1x1x128xf32>
      %202 = vector.shape_cast %201 : vector<1x1x1x128xf32> to vector<1x128xf32>
      %203 = vector.shape_cast %191 : vector<1x128xf32> to vector<1x1x1x128xf32>
      tpu.vector_store %arg5[%c0_106, %c1_107, %c10_108, %c0_109], %203 {strides = array<i32>} : memref<2x3x12x128xf32, #tpu.memory_space<vmem>>, vector<1x1x1x128xf32>,
      %c0_110 = arith.constant 0 : index
      %c2_111 = arith.constant 2 : index
      %c1_112 = arith.constant 1 : index
      %c0_113 = arith.constant 0 : index
      %204 = vector.load %arg5[%c0_110, %c2_111, %c1_112, %c0_113] : memref<2x3x12x128xf32, #tpu.memory_space<vmem>>, vector<1x1x1x128xf32>
      %205 = vector.shape_cast %204 : vector<1x1x1x128xf32> to vector<1x128xf32>
      %206 = vector.shape_cast %191 : vector<1x128xf32> to vector<1x1x1x128xf32>
      tpu.vector_store %arg5[%c0_110, %c2_111, %c1_112, %c0_113], %206 {strides = array<i32>} : memref<2x3x12x128xf32, #tpu.memory_space<vmem>>, vector<1x1x1x128xf32>,
      %c0_114 = arith.constant 0 : index
      %c2_115 = arith.constant 2 : index
      %c10_116 = arith.constant 10 : index
      %c0_117 = arith.constant 0 : index
      %207 = vector.load %arg5[%c0_114, %c2_115, %c10_116, %c0_117] : memref<2x3x12x128xf32, #tpu.memory_space<vmem>>, vector<1x1x1x128xf32>
      %208 = vector.shape_cast %207 : vector<1x1x1x128xf32> to vector<1x128xf32>
      %209 = vector.shape_cast %191 : vector<1x128xf32> to vector<1x1x1x128xf32>
      tpu.vector_store %arg5[%c0_114, %c2_115, %c10_116, %c0_117], %209 {strides = array<i32>} : memref<2x3x12x128xf32, #tpu.memory_space<vmem>>, vector<1x1x1x128xf32>,
      %c1_118 = arith.constant 1 : index
      %c0_119 = arith.constant 0 : index
      %c1_120 = arith.constant 1 : index
      %c0_121 = arith.constant 0 : index
      %210 = vector.load %arg5[%c1_118, %c0_119, %c1_120, %c0_121] : memref<2x3x12x128xf32, #tpu.memory_space<vmem>>, vector<1x1x1x128xf32>
      %211 = vector.shape_cast %210 : vector<1x1x1x128xf32> to vector<1x128xf32>
      %212 = vector.shape_cast %191 : vector<1x128xf32> to vector<1x1x1x128xf32>
      tpu.vector_store %arg5[%c1_118, %c0_119, %c1_120, %c0_121], %212 {strides = array<i32>} : memref<2x3x12x128xf32, #tpu.memory_space<vmem>>, vector<1x1x1x128xf32>,
      %c1_122 = arith.constant 1 : index
      %c0_123 = arith.constant 0 : index
      %c10_124 = arith.constant 10 : index
      %c0_125 = arith.constant 0 : index
      %213 = vector.load %arg5[%c1_122, %c0_123, %c10_124, %c0_125] : memref<2x3x12x128xf32, #tpu.memory_space<vmem>>, vector<1x1x1x128xf32>
      %214 = vector.shape_cast %213 : vector<1x1x1x128xf32> to vector<1x128xf32>
      %215 = vector.shape_cast %191 : vector<1x128xf32> to vector<1x1x1x128xf32>
      tpu.vector_store %arg5[%c1_122, %c0_123, %c10_124, %c0_125], %215 {strides = array<i32>} : memref<2x3x12x128xf32, #tpu.memory_space<vmem>>, vector<1x1x1x128xf32>,
      %c1_126 = arith.constant 1 : index
      %c1_127 = arith.constant 1 : index
      %c1_128 = arith.constant 1 : index
      %c0_129 = arith.constant 0 : index
      %216 = vector.load %arg5[%c1_126, %c1_127, %c1_128, %c0_129] : memref<2x3x12x128xf32, #tpu.memory_space<vmem>>, vector<1x1x1x128xf32>
      %217 = vector.shape_cast %216 : vector<1x1x1x128xf32> to vector<1x128xf32>
      %218 = vector.shape_cast %191 : vector<1x128xf32> to vector<1x1x1x128xf32>
      tpu.vector_store %arg5[%c1_126, %c1_127, %c1_128, %c0_129], %218 {strides = array<i32>} : memref<2x3x12x128xf32, #tpu.memory_space<vmem>>, vector<1x1x1x128xf32>,
      %c1_130 = arith.constant 1 : index
      %c1_131 = arith.constant 1 : index
      %c10_132 = arith.constant 10 : index
      %c0_133 = arith.constant 0 : index
      %219 = vector.load %arg5[%c1_130, %c1_131, %c10_132, %c0_133] : memref<2x3x12x128xf32, #tpu.memory_space<vmem>>, vector<1x1x1x128xf32>
      %220 = vector.shape_cast %219 : vector<1x1x1x128xf32> to vector<1x128xf32>
      %221 = vector.shape_cast %191 : vector<1x128xf32> to vector<1x1x1x128xf32>
      tpu.vector_store %arg5[%c1_130, %c1_131, %c10_132, %c0_133], %221 {strides = array<i32>} : memref<2x3x12x128xf32, #tpu.memory_space<vmem>>, vector<1x1x1x128xf32>,
      %c1_134 = arith.constant 1 : index
      %c2_135 = arith.constant 2 : index
      %c1_136 = arith.constant 1 : index
      %c0_137 = arith.constant 0 : index
      %222 = vector.load %arg5[%c1_134, %c2_135, %c1_136, %c0_137] : memref<2x3x12x128xf32, #tpu.memory_space<vmem>>, vector<1x1x1x128xf32>
      %223 = vector.shape_cast %222 : vector<1x1x1x128xf32> to vector<1x128xf32>
      %224 = vector.shape_cast %191 : vector<1x128xf32> to vector<1x1x1x128xf32>
      tpu.vector_store %arg5[%c1_134, %c2_135, %c1_136, %c0_137], %224 {strides = array<i32>} : memref<2x3x12x128xf32, #tpu.memory_space<vmem>>, vector<1x1x1x128xf32>,
      %c1_138 = arith.constant 1 : index
      %c2_139 = arith.constant 2 : index
      %c10_140 = arith.constant 10 : index
      %c0_141 = arith.constant 0 : index
      %225 = vector.load %arg5[%c1_138, %c2_139, %c10_140, %c0_141] : memref<2x3x12x128xf32, #tpu.memory_space<vmem>>, vector<1x1x1x128xf32>
      %226 = vector.shape_cast %225 : vector<1x1x1x128xf32> to vector<1x128xf32>
      %227 = vector.shape_cast %191 : vector<1x128xf32> to vector<1x1x1x128xf32>
      tpu.vector_store %arg5[%c1_138, %c2_139, %c10_140, %c0_141], %227 {strides = array<i32>} : memref<2x3x12x128xf32, #tpu.memory_space<vmem>>, vector<1x1x1x128xf32>,
      %c8_i32_142 = arith.constant 8 : i32
      %228 = arith.muli %arg1, %c8_i32_142 : i32
      %c1_i32_143 = arith.constant 1 : i32
      %229 = arith.subi %228, %c1_i32_143 : i32
      %c0_i32_144 = arith.constant 0 : i32
      %c6_i32_145 = arith.constant 6 : i32
      %230 = arith.maxsi %c0_i32_144, %229 : i32
      %231 = arith.minsi %c6_i32_145, %230 : i32
      %c8_i32_146 = arith.constant 8 : i32
      %232 = arith.muli %arg1, %c8_i32_146 : i32
      %233 = arith.subi %232, %231 : i32
      %c2_i32_147 = arith.constant 2 : i32
      %234 = arith.subi %c2_i32_147, %233 : i32
      %c0_i32_148 = arith.constant 0 : i32
      %c0_i32_149 = arith.constant 0 : i32
      %235 = tpu.memref_slice %arg2[%arg0, %c0_i32_148, %231, %c0_i32_149] : memref<2x3x16x128xf32, #tpu.memory_space<any>> -> memref<1x3x10x128xf32, #tpu.memory_space<any>>
      %236 = tpu.memref_squeeze %235 : memref<1x3x10x128xf32, #tpu.memory_space<any>> -> memref<3x10x128xf32, #tpu.memory_space<any>>
      %c0_i32_150 = arith.constant 0 : i32
      %c0_i32_151 = arith.constant 0 : i32
      %237 = tpu.memref_slice %arg5[%11, %c0_i32_150, %234, %c0_i32_151] : memref<2x3x12x128xf32, #tpu.memory_space<vmem>> -> memref<1x3x10x128xf32, #tpu.memory_space<vmem>>
      %238 = tpu.memref_squeeze %237 : memref<1x3x10x128xf32, #tpu.memory_space<vmem>> -> memref<3x10x128xf32, #tpu.memory_space<vmem>>
      %239 = tpu.memref_slice %arg6[%11] : memref<2x!tpu.dma_semaphore, #tpu.memory_space<semaphore_mem>> -> memref<1x!tpu.dma_semaphore, #tpu.memory_space<semaphore_mem>>
      %240 = tpu.memref_squeeze %239 : memref<1x!tpu.dma_semaphore, #tpu.memory_space<semaphore_mem>> -> memref<!tpu.dma_semaphore, #tpu.memory_space<semaphore_mem>>
      tpu.enqueue_dma source(%236 : memref<3x10x128xf32, #tpu.memory_space<any>>) target(%238 : memref<3x10x128xf32, #tpu.memory_space<vmem>>) target_semaphore(%240 : memref<!tpu.dma_semaphore, #tpu.memory_space<semaphore_mem>>)
    } else {
    }
    %c1_i32_6 = arith.constant 1 : i32
    %15 = arith.cmpi eq, %arg1, %c1_i32_6 : i32
    %c1_i32_7 = arith.constant 1 : i32
    %16 = arith.addi %arg0, %c1_i32_7 : i32
    %17 = arith.select %15, %16, %arg0 : i32
    %c1_i32_8 = arith.constant 1 : i32
    %18 = arith.addi %arg1, %c1_i32_8 : i32
    %c0_i32_9 = arith.constant 0 : i32
    %19 = arith.select %15, %c0_i32_9, %18 : i32
    %c1_i32_10 = arith.constant 1 : i32
    %20 = arith.addi %1, %c1_i32_10 : i32
    %c4_i32 = arith.constant 4 : i32
    %21 = arith.cmpi slt, %20, %c4_i32 : i32
    %22 = arith.extui %21 : i1 to i32
    %c0_i32_11 = arith.constant 0 : i32
    %23 = arith.cmpi ne, %22, %c0_i32_11 : i32
    scf.if %23 {
      %c1_i32_94 = arith.constant 1 : i32
      %191 = arith.subi %c1_i32_94, %11 : i32
      %c8_i32_95 = arith.constant 8 : i32
      %192 = arith.muli %19, %c8_i32_95 : i32
      %c1_i32_96 = arith.constant 1 : i32
      %193 = arith.subi %192, %c1_i32_96 : i32
      %c0_i32_97 = arith.constant 0 : i32
      %c6_i32_98 = arith.constant 6 : i32
      %194 = arith.maxsi %c0_i32_97, %193 : i32
      %195 = arith.minsi %c6_i32_98, %194 : i32
      %c8_i32_99 = arith.constant 8 : i32
      %196 = arith.muli %19, %c8_i32_99 : i32
      %197 = arith.subi %196, %195 : i32
      %c2_i32_100 = arith.constant 2 : i32
      %198 = arith.subi %c2_i32_100, %197 : i32
      %c0_i32_101 = arith.constant 0 : i32
      %c0_i32_102 = arith.constant 0 : i32
      %199 = tpu.memref_slice %arg2[%17, %c0_i32_101, %195, %c0_i32_102] : memref<2x3x16x128xf32, #tpu.memory_space<any>> -> memref<1x3x10x128xf32, #tpu.memory_space<any>>
      %200 = tpu.memref_squeeze %199 : memref<1x3x10x128xf32, #tpu.memory_space<any>> -> memref<3x10x128xf32, #tpu.memory_space<any>>
      %c0_i32_103 = arith.constant 0 : i32
      %c0_i32_104 = arith.constant 0 : i32
      %201 = tpu.memref_slice %arg5[%191, %c0_i32_103, %198, %c0_i32_104] : memref<2x3x12x128xf32, #tpu.memory_space<vmem>> -> memref<1x3x10x128xf32, #tpu.memory_space<vmem>>
      %202 = tpu.memref_squeeze %201 : memref<1x3x10x128xf32, #tpu.memory_space<vmem>> -> memref<3x10x128xf32, #tpu.memory_space<vmem>>
      %203 = tpu.memref_slice %arg6[%191] : memref<2x!tpu.dma_semaphore, #tpu.memory_space<semaphore_mem>> -> memref<1x!tpu.dma_semaphore, #tpu.memory_space<semaphore_mem>>
      %204 = tpu.memref_squeeze %203 : memref<1x!tpu.dma_semaphore, #tpu.memory_space<semaphore_mem>> -> memref<!tpu.dma_semaphore, #tpu.memory_space<semaphore_mem>>
      tpu.enqueue_dma source(%200 : memref<3x10x128xf32, #tpu.memory_space<any>>) target(%202 : memref<3x10x128xf32, #tpu.memory_space<vmem>>) target_semaphore(%204 : memref<!tpu.dma_semaphore, #tpu.memory_space<semaphore_mem>>)
    } else {
    }
    %c8_i32 = arith.constant 8 : i32
    %24 = arith.muli %arg1, %c8_i32 : i32
    %c1_i32_12 = arith.constant 1 : i32
    %25 = arith.subi %24, %c1_i32_12 : i32
    %c0_i32_13 = arith.constant 0 : i32
    %c6_i32 = arith.constant 6 : i32
    %26 = arith.maxsi %c0_i32_13, %25 : i32
    %27 = arith.minsi %c6_i32, %26 : i32
    %c8_i32_14 = arith.constant 8 : i32
    %28 = arith.muli %arg1, %c8_i32_14 : i32
    %29 = arith.subi %28, %27 : i32
    %c2_i32_15 = arith.constant 2 : i32
    %30 = arith.subi %c2_i32_15, %29 : i32
    %c0_i32_16 = arith.constant 0 : i32
    %c0_i32_17 = arith.constant 0 : i32
    %31 = tpu.memref_slice %arg2[%arg0, %c0_i32_16, %27, %c0_i32_17] : memref<2x3x16x128xf32, #tpu.memory_space<any>> -> memref<1x3x10x128xf32, #tpu.memory_space<any>>
    %32 = tpu.memref_squeeze %31 : memref<1x3x10x128xf32, #tpu.memory_space<any>> -> memref<3x10x128xf32, #tpu.memory_space<any>>
    %c0_i32_18 = arith.constant 0 : i32
    %c0_i32_19 = arith.constant 0 : i32
    %33 = tpu.memref_slice %arg5[%11, %c0_i32_18, %30, %c0_i32_19] : memref<2x3x12x128xf32, #tpu.memory_space<vmem>> -> memref<1x3x10x128xf32, #tpu.memory_space<vmem>>
    %34 = tpu.memref_squeeze %33 : memref<1x3x10x128xf32, #tpu.memory_space<vmem>> -> memref<3x10x128xf32, #tpu.memory_space<vmem>>
    %35 = tpu.memref_slice %arg6[%11] : memref<2x!tpu.dma_semaphore, #tpu.memory_space<semaphore_mem>> -> memref<1x!tpu.dma_semaphore, #tpu.memory_space<semaphore_mem>>
    %36 = tpu.memref_squeeze %35 : memref<1x!tpu.dma_semaphore, #tpu.memory_space<semaphore_mem>> -> memref<!tpu.dma_semaphore, #tpu.memory_space<semaphore_mem>>
    tpu.wait_dma2 semaphore(%36 : memref<!tpu.dma_semaphore, #tpu.memory_space<semaphore_mem>>) src(%32 : memref<3x10x128xf32, #tpu.memory_space<any>>) dst(%34 : memref<3x10x128xf32, #tpu.memory_space<vmem>>)
    %37 = tpu.iota {dimensions = array<i32: 1>} : vector<1x128xi32>
    %c0 = arith.constant 0 : index
    %c0_20 = arith.constant 0 : index
    %38 = vector.load %arg3[%c0, %c0_20] : memref<1x128xi32, #tpu.memory_space<vmem>>, vector<1x128xi32>
    %c0_i32_21 = arith.constant 0 : i32
    %39 = vector.broadcast %c0_i32_21 : i32 to vector<1x128xi32>
    %40 = arith.cmpi eq, %38, %39 : vector<1x128xi32>
    %c15_i32 = arith.constant 15 : i32
    %41 = vector.broadcast %c15_i32 : i32 to vector<1x128xi32>
    %42 = arith.cmpi eq, %38, %41 : vector<1x128xi32>
    %c16_i32 = arith.constant 16 : i32
    %43 = vector.broadcast %c16_i32 : i32 to vector<1x128xi32>
    %44 = arith.cmpi slt, %37, %43 : vector<1x128xi32>
    %c112_i32 = arith.constant 112 : i32
    %45 = vector.broadcast %c112_i32 : i32 to vector<1x128xi32>
    %46 = arith.cmpi sge, %37, %45 : vector<1x128xi32>
    %c8_i32_22 = arith.constant 8 : i32
    %47 = arith.muli %arg1, %c8_i32_22 : i32
    %48 = tpu.iota {dimensions = array<i32: 0>} : vector<8x1xi32>
    %49 = vector.broadcast %47 : i32 to vector<8x1xi32>
    %50 = arith.addi %49, %48 : vector<8x1xi32>
    %c0_i32_23 = arith.constant 0 : i32
    %51 = vector.broadcast %c0_i32_23 : i32 to vector<8x1xi32>
    %52 = arith.cmpi eq, %50, %51 : vector<8x1xi32>
    %c15_i32_24 = arith.constant 15 : i32
    %53 = vector.broadcast %c15_i32_24 : i32 to vector<8x1xi32>
    %54 = arith.cmpi eq, %50, %53 : vector<8x1xi32>
    %c0_i32_25 = arith.constant 0 : i32
    %55 = arith.cmpi eq, %arg1, %c0_i32_25 : i32
    %c1_i32_26 = arith.constant 1 : i32
    %56 = arith.cmpi eq, %arg1, %c1_i32_26 : i32
    %57 = arith.ori %55, %56 : i1
    %c1_i32_27 = arith.constant 1 : i32
    %c0_i32_28 = arith.constant 0 : i32
    %c0_i32_29 = arith.constant 0 : i32
    %58 = tpu.memref_slice %arg5[%11, %c1_i32_27, %c0_i32_28, %c0_i32_29] : memref<2x3x12x128xf32, #tpu.memory_space<vmem>> -> memref<1x1x12x128xf32, #tpu.memory_space<vmem>>
    %59 = tpu.memref_squeeze %58 : memref<1x1x12x128xf32, #tpu.memory_space<vmem>> -> memref<12x128xf32, #tpu.memory_space<vmem>>
    %c2 = arith.constant 2 : index
    %c0_30 = arith.constant 0 : index
    %60 = vector.load %59[%c2, %c0_30] : memref<12x128xf32, #tpu.memory_space<vmem>>, vector<8x128xf32>
    %c1_i32_31 = arith.constant 1 : i32
    %c0_i32_32 = arith.constant 0 : i32
    %c0_i32_33 = arith.constant 0 : i32
    %61 = tpu.memref_slice %arg5[%11, %c1_i32_31, %c0_i32_32, %c0_i32_33] : memref<2x3x12x128xf32, #tpu.memory_space<vmem>> -> memref<1x1x12x128xf32, #tpu.memory_space<vmem>>
    %62 = tpu.memref_squeeze %61 : memref<1x1x12x128xf32, #tpu.memory_space<vmem>> -> memref<12x128xf32, #tpu.memory_space<vmem>>
    %c3 = arith.constant 3 : index
    %c0_34 = arith.constant 0 : index
    %63 = vector.load %62[%c3, %c0_34] : memref<12x128xf32, #tpu.memory_space<vmem>>, vector<8x128xf32>
    %c1_i32_35 = arith.constant 1 : i32
    %c0_i32_36 = arith.constant 0 : i32
    %c0_i32_37 = arith.constant 0 : i32
    %64 = tpu.memref_slice %arg5[%11, %c1_i32_35, %c0_i32_36, %c0_i32_37] : memref<2x3x12x128xf32, #tpu.memory_space<vmem>> -> memref<1x1x12x128xf32, #tpu.memory_space<vmem>>
    %65 = tpu.memref_squeeze %64 : memref<1x1x12x128xf32, #tpu.memory_space<vmem>> -> memref<12x128xf32, #tpu.memory_space<vmem>>
    %c1 = arith.constant 1 : index
    %c0_38 = arith.constant 0 : index
    %66 = vector.load %65[%c1, %c0_38] : memref<12x128xf32, #tpu.memory_space<vmem>>, vector<8x128xf32>
    %67 = arith.extui %57 : i1 to i32
    %c0_i32_39 = arith.constant 0 : i32
    %68 = arith.cmpi ne, %67, %c0_i32_39 : i32
    %69 = scf.if %68 -> (vector<8x128xf32>) {
      %191 = arith.subf %63, %60 : vector<8x128xf32>
      %192 = arith.subf %60, %66 : vector<8x128xf32>
      %193 = arith.subf %63, %66 : vector<8x128xf32>
      %cst_94 = arith.constant 5.000000e-01 : f32
      %194 = vector.broadcast %cst_94 : f32 to vector<8x128xf32>
      %195 = arith.mulf %193, %194 : vector<8x128xf32>
      %196 = vector.shape_cast %54 : vector<8x1xi1> to vector<8x1xi1>
      %197 = vector.broadcast %196 : vector<8x1xi1> to vector<8x128xi1>
      %198 = arith.select %197, %192, %195 : vector<8x128xi1>, vector<8x128xf32>
      %199 = vector.shape_cast %52 : vector<8x1xi1> to vector<8x1xi1>
      %200 = vector.broadcast %199 : vector<8x1xi1> to vector<8x128xi1>
      %201 = arith.select %200, %191, %198 : vector<8x128xi1>, vector<8x128xf32>
      scf.yield %201 : vector<8x128xf32>
    } else {
      %191 = arith.subf %63, %66 : vector<8x128xf32>
      %cst_94 = arith.constant 5.000000e-01 : f32
      %192 = vector.broadcast %cst_94 : f32 to vector<8x128xf32>
      %193 = arith.mulf %191, %192 : vector<8x128xf32>
      scf.yield %193 : vector<8x128xf32>
    }
    %c112_i32_40 = arith.constant 112 : i32
    %70 = tpu.dynamic_rotate %60 by %c112_i32_40 dim 1 : vector<8x128xf32>, i32 -> vector<8x128xf32>
    %71 = arith.subf %70, %60 : vector<8x128xf32>
    %c16_i32_41 = arith.constant 16 : i32
    %72 = tpu.dynamic_rotate %71 by %c16_i32_41 dim 1 : vector<8x128xf32>, i32 -> vector<8x128xf32>
    %73 = arith.addf %71, %72 : vector<8x128xf32>
    %cst = arith.constant 5.000000e-01 : f32
    %74 = vector.broadcast %cst : f32 to vector<8x128xf32>
    %75 = arith.mulf %73, %74 : vector<8x128xf32>
    %76 = vector.shape_cast %46 : vector<1x128xi1> to vector<1x128xi1>
    %77 = vector.broadcast %76 : vector<1x128xi1> to vector<8x128xi1>
    %78 = arith.select %77, %72, %75 : vector<8x128xi1>, vector<8x128xf32>
    %79 = vector.shape_cast %44 : vector<1x128xi1> to vector<1x128xi1>
    %80 = vector.broadcast %79 : vector<1x128xi1> to vector<8x128xi1>
    %81 = arith.select %80, %71, %78 : vector<8x128xi1>, vector<8x128xf32>
    %c127_i32 = arith.constant 127 : i32
    %82 = tpu.dynamic_rotate %60 by %c127_i32 dim 1 : vector<8x128xf32>, i32 -> vector<8x128xf32>
    %83 = arith.subf %82, %60 : vector<8x128xf32>
    %c1_i32_42 = arith.constant 1 : i32
    %84 = tpu.dynamic_rotate %83 by %c1_i32_42 dim 1 : vector<8x128xf32>, i32 -> vector<8x128xf32>
    %85 = arith.addf %83, %84 : vector<8x128xf32>
    %cst_43 = arith.constant 5.000000e-01 : f32
    %86 = vector.broadcast %cst_43 : f32 to vector<8x128xf32>
    %87 = arith.mulf %85, %86 : vector<8x128xf32>
    %88 = vector.shape_cast %42 : vector<1x128xi1> to vector<1x128xi1>
    %89 = vector.broadcast %88 : vector<1x128xi1> to vector<8x128xi1>
    %90 = arith.select %89, %84, %87 : vector<8x128xi1>, vector<8x128xf32>
    %91 = vector.shape_cast %40 : vector<1x128xi1> to vector<1x128xi1>
    %92 = vector.broadcast %91 : vector<1x128xi1> to vector<8x128xi1>
    %93 = arith.select %92, %83, %90 : vector<8x128xi1>, vector<8x128xf32>
    %cst_44 = arith.constant 1.000000e+00 : f32
    %94 = vector.broadcast %cst_44 : f32 to vector<8x128xf32>
    %95 = arith.addf %81, %94 : vector<8x128xf32>
    %c2_i32_45 = arith.constant 2 : i32
    %c0_i32_46 = arith.constant 0 : i32
    %c0_i32_47 = arith.constant 0 : i32
    %96 = tpu.memref_slice %arg5[%11, %c2_i32_45, %c0_i32_46, %c0_i32_47] : memref<2x3x12x128xf32, #tpu.memory_space<vmem>> -> memref<1x1x12x128xf32, #tpu.memory_space<vmem>>
    %97 = tpu.memref_squeeze %96 : memref<1x1x12x128xf32, #tpu.memory_space<vmem>> -> memref<12x128xf32, #tpu.memory_space<vmem>>
    %c2_48 = arith.constant 2 : index
    %c0_49 = arith.constant 0 : index
    %98 = vector.load %97[%c2_48, %c0_49] : memref<12x128xf32, #tpu.memory_space<vmem>>, vector<8x128xf32>
    %c2_i32_50 = arith.constant 2 : i32
    %c0_i32_51 = arith.constant 0 : i32
    %c0_i32_52 = arith.constant 0 : i32
    %99 = tpu.memref_slice %arg5[%11, %c2_i32_50, %c0_i32_51, %c0_i32_52] : memref<2x3x12x128xf32, #tpu.memory_space<vmem>> -> memref<1x1x12x128xf32, #tpu.memory_space<vmem>>
    %100 = tpu.memref_squeeze %99 : memref<1x1x12x128xf32, #tpu.memory_space<vmem>> -> memref<12x128xf32, #tpu.memory_space<vmem>>
    %c3_53 = arith.constant 3 : index
    %c0_54 = arith.constant 0 : index
    %101 = vector.load %100[%c3_53, %c0_54] : memref<12x128xf32, #tpu.memory_space<vmem>>, vector<8x128xf32>
    %c2_i32_55 = arith.constant 2 : i32
    %c0_i32_56 = arith.constant 0 : i32
    %c0_i32_57 = arith.constant 0 : i32
    %102 = tpu.memref_slice %arg5[%11, %c2_i32_55, %c0_i32_56, %c0_i32_57] : memref<2x3x12x128xf32, #tpu.memory_space<vmem>> -> memref<1x1x12x128xf32, #tpu.memory_space<vmem>>
    %103 = tpu.memref_squeeze %102 : memref<1x1x12x128xf32, #tpu.memory_space<vmem>> -> memref<12x128xf32, #tpu.memory_space<vmem>>
    %c1_58 = arith.constant 1 : index
    %c0_59 = arith.constant 0 : index
    %104 = vector.load %103[%c1_58, %c0_59] : memref<12x128xf32, #tpu.memory_space<vmem>>, vector<8x128xf32>
    %105 = arith.extui %57 : i1 to i32
    %c0_i32_60 = arith.constant 0 : i32
    %106 = arith.cmpi ne, %105, %c0_i32_60 : i32
    %107 = scf.if %106 -> (vector<8x128xf32>) {
      %191 = arith.subf %101, %98 : vector<8x128xf32>
      %192 = arith.subf %98, %104 : vector<8x128xf32>
      %193 = arith.subf %101, %104 : vector<8x128xf32>
      %cst_94 = arith.constant 5.000000e-01 : f32
      %194 = vector.broadcast %cst_94 : f32 to vector<8x128xf32>
      %195 = arith.mulf %193, %194 : vector<8x128xf32>
      %196 = vector.shape_cast %54 : vector<8x1xi1> to vector<8x1xi1>
      %197 = vector.broadcast %196 : vector<8x1xi1> to vector<8x128xi1>
      %198 = arith.select %197, %192, %195 : vector<8x128xi1>, vector<8x128xf32>
      %199 = vector.shape_cast %52 : vector<8x1xi1> to vector<8x1xi1>
      %200 = vector.broadcast %199 : vector<8x1xi1> to vector<8x128xi1>
      %201 = arith.select %200, %191, %198 : vector<8x128xi1>, vector<8x128xf32>
      scf.yield %201 : vector<8x128xf32>
    } else {
      %191 = arith.subf %101, %104 : vector<8x128xf32>
      %cst_94 = arith.constant 5.000000e-01 : f32
      %192 = vector.broadcast %cst_94 : f32 to vector<8x128xf32>
      %193 = arith.mulf %191, %192 : vector<8x128xf32>
      scf.yield %193 : vector<8x128xf32>
    }
    %c112_i32_61 = arith.constant 112 : i32
    %108 = tpu.dynamic_rotate %98 by %c112_i32_61 dim 1 : vector<8x128xf32>, i32 -> vector<8x128xf32>
    %109 = arith.subf %108, %98 : vector<8x128xf32>
    %c16_i32_62 = arith.constant 16 : i32
    %110 = tpu.dynamic_rotate %109 by %c16_i32_62 dim 1 : vector<8x128xf32>, i32 -> vector<8x128xf32>
    %111 = arith.addf %109, %110 : vector<8x128xf32>
    %cst_63 = arith.constant 5.000000e-01 : f32
    %112 = vector.broadcast %cst_63 : f32 to vector<8x128xf32>
    %113 = arith.mulf %111, %112 : vector<8x128xf32>
    %114 = vector.shape_cast %46 : vector<1x128xi1> to vector<1x128xi1>
    %115 = vector.broadcast %114 : vector<1x128xi1> to vector<8x128xi1>
    %116 = arith.select %115, %110, %113 : vector<8x128xi1>, vector<8x128xf32>
    %117 = vector.shape_cast %44 : vector<1x128xi1> to vector<1x128xi1>
    %118 = vector.broadcast %117 : vector<1x128xi1> to vector<8x128xi1>
    %119 = arith.select %118, %109, %116 : vector<8x128xi1>, vector<8x128xf32>
    %c127_i32_64 = arith.constant 127 : i32
    %120 = tpu.dynamic_rotate %98 by %c127_i32_64 dim 1 : vector<8x128xf32>, i32 -> vector<8x128xf32>
    %121 = arith.subf %120, %98 : vector<8x128xf32>
    %c1_i32_65 = arith.constant 1 : i32
    %122 = tpu.dynamic_rotate %121 by %c1_i32_65 dim 1 : vector<8x128xf32>, i32 -> vector<8x128xf32>
    %123 = arith.addf %121, %122 : vector<8x128xf32>
    %cst_66 = arith.constant 5.000000e-01 : f32
    %124 = vector.broadcast %cst_66 : f32 to vector<8x128xf32>
    %125 = arith.mulf %123, %124 : vector<8x128xf32>
    %126 = vector.shape_cast %42 : vector<1x128xi1> to vector<1x128xi1>
    %127 = vector.broadcast %126 : vector<1x128xi1> to vector<8x128xi1>
    %128 = arith.select %127, %122, %125 : vector<8x128xi1>, vector<8x128xf32>
    %129 = vector.shape_cast %40 : vector<1x128xi1> to vector<1x128xi1>
    %130 = vector.broadcast %129 : vector<1x128xi1> to vector<8x128xi1>
    %131 = arith.select %130, %121, %128 : vector<8x128xi1>, vector<8x128xf32>
    %cst_67 = arith.constant 1.000000e+00 : f32
    %132 = vector.broadcast %cst_67 : f32 to vector<8x128xf32>
    %133 = arith.addf %131, %132 : vector<8x128xf32>
    %134 = arith.mulf %95, %133 : vector<8x128xf32>
    %135 = arith.mulf %93, %119 : vector<8x128xf32>
    %136 = arith.subf %134, %135 : vector<8x128xf32>
    %137 = arith.mulf %69, %133 : vector<8x128xf32>
    %138 = arith.mulf %93, %107 : vector<8x128xf32>
    %139 = arith.subf %137, %138 : vector<8x128xf32>
    %140 = arith.mulf %69, %119 : vector<8x128xf32>
    %141 = arith.mulf %95, %107 : vector<8x128xf32>
    %142 = arith.subf %140, %141 : vector<8x128xf32>
    %c0_i32_68 = arith.constant 0 : i32
    %c0_i32_69 = arith.constant 0 : i32
    %c0_i32_70 = arith.constant 0 : i32
    %143 = tpu.memref_slice %arg5[%11, %c0_i32_68, %c0_i32_69, %c0_i32_70] : memref<2x3x12x128xf32, #tpu.memory_space<vmem>> -> memref<1x1x12x128xf32, #tpu.memory_space<vmem>>
    %144 = tpu.memref_squeeze %143 : memref<1x1x12x128xf32, #tpu.memory_space<vmem>> -> memref<12x128xf32, #tpu.memory_space<vmem>>
    %c2_71 = arith.constant 2 : index
    %c0_72 = arith.constant 0 : index
    %145 = vector.load %144[%c2_71, %c0_72] : memref<12x128xf32, #tpu.memory_space<vmem>>, vector<8x128xf32>
    %c0_i32_73 = arith.constant 0 : i32
    %c0_i32_74 = arith.constant 0 : i32
    %c0_i32_75 = arith.constant 0 : i32
    %146 = tpu.memref_slice %arg5[%11, %c0_i32_73, %c0_i32_74, %c0_i32_75] : memref<2x3x12x128xf32, #tpu.memory_space<vmem>> -> memref<1x1x12x128xf32, #tpu.memory_space<vmem>>
    %147 = tpu.memref_squeeze %146 : memref<1x1x12x128xf32, #tpu.memory_space<vmem>> -> memref<12x128xf32, #tpu.memory_space<vmem>>
    %c3_76 = arith.constant 3 : index
    %c0_77 = arith.constant 0 : index
    %148 = vector.load %147[%c3_76, %c0_77] : memref<12x128xf32, #tpu.memory_space<vmem>>, vector<8x128xf32>
    %c0_i32_78 = arith.constant 0 : i32
    %c0_i32_79 = arith.constant 0 : i32
    %c0_i32_80 = arith.constant 0 : i32
    %149 = tpu.memref_slice %arg5[%11, %c0_i32_78, %c0_i32_79, %c0_i32_80] : memref<2x3x12x128xf32, #tpu.memory_space<vmem>> -> memref<1x1x12x128xf32, #tpu.memory_space<vmem>>
    %150 = tpu.memref_squeeze %149 : memref<1x1x12x128xf32, #tpu.memory_space<vmem>> -> memref<12x128xf32, #tpu.memory_space<vmem>>
    %c1_81 = arith.constant 1 : index
    %c0_82 = arith.constant 0 : index
    %151 = vector.load %150[%c1_81, %c0_82] : memref<12x128xf32, #tpu.memory_space<vmem>>, vector<8x128xf32>
    %152 = arith.extui %57 : i1 to i32
    %c0_i32_83 = arith.constant 0 : i32
    %153 = arith.cmpi ne, %152, %c0_i32_83 : i32
    %154 = scf.if %153 -> (vector<8x128xf32>) {
      %191 = arith.subf %148, %145 : vector<8x128xf32>
      %192 = arith.subf %145, %151 : vector<8x128xf32>
      %193 = arith.subf %148, %151 : vector<8x128xf32>
      %cst_94 = arith.constant 5.000000e-01 : f32
      %194 = vector.broadcast %cst_94 : f32 to vector<8x128xf32>
      %195 = arith.mulf %193, %194 : vector<8x128xf32>
      %196 = vector.shape_cast %54 : vector<8x1xi1> to vector<8x1xi1>
      %197 = vector.broadcast %196 : vector<8x1xi1> to vector<8x128xi1>
      %198 = arith.select %197, %192, %195 : vector<8x128xi1>, vector<8x128xf32>
      %199 = vector.shape_cast %52 : vector<8x1xi1> to vector<8x1xi1>
      %200 = vector.broadcast %199 : vector<8x1xi1> to vector<8x128xi1>
      %201 = arith.select %200, %191, %198 : vector<8x128xi1>, vector<8x128xf32>
      scf.yield %201 : vector<8x128xf32>
    } else {
      %191 = arith.subf %148, %151 : vector<8x128xf32>
      %cst_94 = arith.constant 5.000000e-01 : f32
      %192 = vector.broadcast %cst_94 : f32 to vector<8x128xf32>
      %193 = arith.mulf %191, %192 : vector<8x128xf32>
      scf.yield %193 : vector<8x128xf32>
    }
    %c112_i32_84 = arith.constant 112 : i32
    %155 = tpu.dynamic_rotate %145 by %c112_i32_84 dim 1 : vector<8x128xf32>, i32 -> vector<8x128xf32>
    %156 = arith.subf %155, %145 : vector<8x128xf32>
    %c16_i32_85 = arith.constant 16 : i32
    %157 = tpu.dynamic_rotate %156 by %c16_i32_85 dim 1 : vector<8x128xf32>, i32 -> vector<8x128xf32>
    %158 = arith.addf %156, %157 : vector<8x128xf32>
    %cst_86 = arith.constant 5.000000e-01 : f32
    %159 = vector.broadcast %cst_86 : f32 to vector<8x128xf32>
    %160 = arith.mulf %158, %159 : vector<8x128xf32>
    %161 = vector.shape_cast %46 : vector<1x128xi1> to vector<1x128xi1>
    %162 = vector.broadcast %161 : vector<1x128xi1> to vector<8x128xi1>
    %163 = arith.select %162, %157, %160 : vector<8x128xi1>, vector<8x128xf32>
    %164 = vector.shape_cast %44 : vector<1x128xi1> to vector<1x128xi1>
    %165 = vector.broadcast %164 : vector<1x128xi1> to vector<8x128xi1>
    %166 = arith.select %165, %156, %163 : vector<8x128xi1>, vector<8x128xf32>
    %c127_i32_87 = arith.constant 127 : i32
    %167 = tpu.dynamic_rotate %145 by %c127_i32_87 dim 1 : vector<8x128xf32>, i32 -> vector<8x128xf32>
    %168 = arith.subf %167, %145 : vector<8x128xf32>
    %c1_i32_88 = arith.constant 1 : i32
    %169 = tpu.dynamic_rotate %168 by %c1_i32_88 dim 1 : vector<8x128xf32>, i32 -> vector<8x128xf32>
    %170 = arith.addf %168, %169 : vector<8x128xf32>
    %cst_89 = arith.constant 5.000000e-01 : f32
    %171 = vector.broadcast %cst_89 : f32 to vector<8x128xf32>
    %172 = arith.mulf %170, %171 : vector<8x128xf32>
    %173 = vector.shape_cast %42 : vector<1x128xi1> to vector<1x128xi1>
    %174 = vector.broadcast %173 : vector<1x128xi1> to vector<8x128xi1>
    %175 = arith.select %174, %169, %172 : vector<8x128xi1>, vector<8x128xf32>
    %176 = vector.shape_cast %40 : vector<1x128xi1> to vector<1x128xi1>
    %177 = vector.broadcast %176 : vector<1x128xi1> to vector<8x128xi1>
    %178 = arith.select %177, %168, %175 : vector<8x128xi1>, vector<8x128xf32>
    %cst_90 = arith.constant 1.000000e+00 : f32
    %179 = vector.broadcast %cst_90 : f32 to vector<8x128xf32>
    %180 = arith.addf %154, %179 : vector<8x128xf32>
    %181 = arith.mulf %180, %136 : vector<8x128xf32>
    %182 = arith.mulf %166, %139 : vector<8x128xf32>
    %183 = arith.subf %181, %182 : vector<8x128xf32>
    %184 = arith.mulf %178, %142 : vector<8x128xf32>
    %185 = arith.addf %183, %184 : vector<8x128xf32>
    %186 = math.log %185 : vector<8x128xf32>
    %187 = arith.mulf %186, %186 : vector<8x128xf32>
    %c0_91 = arith.constant 0 : index
    %c0_92 = arith.constant 0 : index
    %c0_93 = arith.constant 0 : index
    %188 = vector.load %arg4[%c0_91, %c0_92, %c0_93] : memref<1x8x128xf32, #tpu.memory_space<vmem>>, vector<1x8x128xf32>
    %189 = vector.shape_cast %188 : vector<1x8x128xf32> to vector<8x128xf32>
    %190 = vector.shape_cast %187 : vector<8x128xf32> to vector<1x8x128xf32>
    tpu.vector_store %arg4[%c0_91, %c0_92, %c0_93], %190 {strides = array<i32>} : memref<1x8x128xf32, #tpu.memory_space<vmem>>, vector<1x8x128xf32>,
    return
  }
  func.func @transform_1(%arg0: i32, %arg1: i32) -> (i32, i32) {
    %c0_i32 = arith.constant 0 : i32
    %c0_i32_0 = arith.constant 0 : i32
    %c0_i32_1 = arith.constant 0 : i32
    return %c0_i32, %c0_i32_0 : i32, i32
  }
  func.func @transform_2(%arg0: i32, %arg1: i32) -> (i32, i32, i32) {
    %c0_i32 = arith.constant 0 : i32
    %c0_i32_0 = arith.constant 0 : i32
    return %arg0, %arg1, %c0_i32 : i32, i32, i32
  }
}

</mosaic_0001>

<llo_original>
// kernel: tpu_custom_call.1
$region0: #{tpu_custom_call.1}
  #allocation0 [shape = 'u32[]', space=smem, size = 0x4, offset = 0x4, fixed_abs, tag = 'smem constant byte address 0x4 - core index']
  #allocation1 [shape = 'u32[144,128]{1,0:T(1,128)}', space=vmem, size = 0x12000, scoped, tag = 'internal scratch']
  #allocation2 [shape = 'f32[2,3,12,128]{3,2,1,0:T(8,128)}', space=vmem, size = 0xc000, scoped, tag = 'scratch operand']
  #allocation3 [shape = 's32[2]{0}', space=sflag, size = 0x8, scoped, tag = 'scratch operand']
  #allocation6 [shape = 's32[]', space=sflag, size = 0x4, offset = 0, fixed_abs, tag = 'sflag constant byte address 0x0 - dummy sync flag']
  #allocation7 [shape = 's32[]', space=sflag, size = 0x4, offset = 0, fixed_abs, tag = 'sflag constant byte address 0x0 - dummy sync flag']
  %s0 = inlined_call_operand.hbm [shape: f32[2,3,16,128], index: 0, kind: input, shape index: {}]
  %s1 = inlined_call_operand.vmem [shape: s32[1,128], index: 1, kind: input, shape index: {}]
  %s2 = inlined_call_operand.hbm [shape: f32[2,16,128], index: 2, kind: output, shape index: {}]
  %s3 = sld [smem:[#allocation0]]
  $region69: #{tpu_custom_call.1} parent=0
    _
  %s5 = ssub.s32 1, %s3
  %s6 = scalar_select 0, %s5, %s3
  $region1: #{tpu_custom_call.1} parent=0
    #allocation4 [shape = 'u8[8192]{0}', space=vmem, size = 0x2000, scoped, tag = 'output window, operand 0']
    #allocation5 [shape = 's32[2]{0}', space=sflag, size = 0x8, scoped, tag = 'scoped memory for tpu_custom_call.1']
    %7 = vsyncpa [#allocation5], 0
    %s8 = scalar_lea.sflag [#allocation5], 1
    %9 = vsyncpa %s8, 0
    loop: start=0, step=1, limit=6
    $region2: #{tpu_custom_call.1} parent=1 // loop_pre_header
      _
    $region3: #{tpu_custom_call.1} parent=1 // loop_header
      %s11 = sphi 0, %s15
      %p12 = scmp.ge.s32.totalorder %s11, 6
      %s18 = sphi 0, %s30
      %s19 = sphi 0, %s26
      %s20 = sphi 0, %s18
      %s21 = sphi 0, %s19
      %s22 = sphi 0, %s20
      %s23 = sphi 0, %s21
      %s31 = sphi 0, %s31
      %s33 = sphi 0, %s31
      %s34 = sphi 0, %s33
      %s48 = sphi 0, %s34
      %s56 = sphi 0, %s58
      %s59 = sphi 0, %s56
      %s60 = sphi 0, %s59
      %s76 = sphi 0, %s60
    $region4: #{tpu_custom_call.1} parent=1 // loop_header_branch
      %14 = sbr.rel (%p12) target = $region8
    $region5: #{tpu_custom_call.1} parent=1 // loop_body
      %s16 = ssub.s32 %s11, 1
      %s17 = ssub.s32 %s11, 2
      %s24 = sadd.s32 1, %s19
      %p25 = scmp.ge.s32.totalorder %s24, 2
      %s26 = scalar_select %p25, 0, %s24
      %s27 = sadd.s32 1, %s18
      %s28 = scalar_select %p25, %s27, %s18
      %p29 = scmp.ge.s32.totalorder %s28, 2
      %s30 = scalar_select %p29, 0, %s28
      %s32 = sadd.s32 %s31, 1
      %p35 = scmp.eq.s32.totalorder %s11, 3
      %p36 = scmp.ne.s32.totalorder %s31, %s33
      %p37 = scmp.eq.s32.totalorder %s11, 0
      %p38 = por %p36, %p37
      %p39 = scmp.ne.s32.totalorder %s31, %s33
      %p40 = scmp.eq.s32.totalorder %s16, 3
      %p41 = por %p39, %p40
      %p42 = scmp.ne.s32.totalorder %s33, %s34
      %p43 = scmp.eq.s32.totalorder %s16, 0
      %p44 = por %p42, %p43
      %p45 = scmp.ne.s32.totalorder %s33, %s34
      %p46 = scmp.eq.s32.totalorder %s17, 3
      %p47 = por %p45, %p46
      %p49 = scmp.ne.s32.totalorder %s34, %s48
      %p50 = scmp.eq.s32.totalorder %s17, 0
      %p51 = por %p49, %p50
      %s52 = ssub.s32 %s18, %s30
      %s53 = ssub.s32 %s19, %s26
      %s54 = sor.u32 %s52, %s53
      %p55 = scmp.eq.s32.totalorder %s54, 0
      %s57 = sadd.s32 %s56, 1
      %s58 = scalar_select %p55, %s56, %s57
      %p61 = pneg %p55
      %p62 = scmp.eq.s32.totalorder %s11, 3
      %p63 = por %p61, %p62
      %p64 = scmp.ne.s32.totalorder %s56, %s59
      %p65 = scmp.eq.s32.totalorder %s11, 0
      %p66 = por %p64, %p65
      %p67 = scmp.ne.s32.totalorder %s56, %s59
      %p68 = scmp.eq.s32.totalorder %s16, 3
      %p69 = por %p67, %p68
      %p70 = scmp.ne.s32.totalorder %s59, %s60
      %p71 = scmp.eq.s32.totalorder %s16, 0
      %p72 = por %p70, %p71
      %p73 = scmp.ne.s32.totalorder %s59, %s60
      %p74 = scmp.eq.s32.totalorder %s17, 3
      %p75 = por %p73, %p74
      %p77 = scmp.ne.s32.totalorder %s60, %s76
      %p78 = scmp.eq.s32.totalorder %s17, 0
      %p79 = por %p77, %p78
      %p80 = scmp.le.s32.totalorder 1, %s11
      %p81 = scmp.lt.s32.totalorder %s11, 5
      %p82 = pnand %p80, %p81
      %p83 = pneg %p82
      // Predicated region
      $region9: #{tpu_custom_call.1} parent=5 // pred_check
        _
      $region10: #{tpu_custom_call.1} parent=5 // pred_check_branch
        %85 = sbr.rel (%p82) target = $region12
      $region11: #{tpu_custom_call.1} parent=5 // pred_region
        %s86 = ssub.s32 %s11, 1
        // Predicated region
        $region13: #{tpu_custom_call.1} parent=11 // pred_check
          %p87 = pneg %p44
        $region14: #{tpu_custom_call.1} parent=11 // pred_check_branch
          %89 = sbr.rel (%p87) target = $region16
        $region15: #{tpu_custom_call.1} parent=11 // pred_region
          _
        $region16: #{tpu_custom_call.1} parent=11 // pred_fallthru
          _
      $region12: #{tpu_custom_call.1} parent=5 // pred_fallthru
        _
      %p90 = scmp.lt.s32.totalorder %s11, 4
      // Predicated region
      $region17: #{tpu_custom_call.1} parent=5 // pred_check
        %p91 = pneg %p90
      $region18: #{tpu_custom_call.1} parent=5 // pred_check_branch
        %93 = sbr.rel (%p91) target = $region20
      $region19: #{tpu_custom_call.1} parent=5 // pred_region
        _
      $region20: #{tpu_custom_call.1} parent=5 // pred_fallthru
        _
      %p94 = scmp.le.s32.totalorder 1, %s11
      %p95 = scmp.lt.s32.totalorder %s11, 5
      %p96 = pnand %p94, %p95
      %p97 = pneg %p96
      // Predicated region
      $region21: #{tpu_custom_call.1} parent=5 // pred_check
        _
      $region22: #{tpu_custom_call.1} parent=5 // pred_check_branch
        %99 = sbr.rel (%p96) target = $region24
      $region23: #{tpu_custom_call.1} parent=5 // pred_region
        %s100 = ssub.s32 %s11, 1
        %p101 = pneg %p44
        %p102 = pneg %p41
        %p103 = pneg %p72
        %p104 = pneg %p69
        %s105 = sand.u32 %s59, 1
        %s106 = scalar_lea.sflag [#allocation5], %s105
        %s107 = sand.u32 %s59, 1
        %s108 = smul.addr %s107, 8
        %s109 = scalar_lea.vmem [#allocation4], %s108
        %s110 = smul.u32 %s20, 2
        %s111 = sadd.s32 %s110, %s21
        %p112 = scmp.lt.s32.totalorder %s111, 0
        %s113 = ssub.s32 0, %s111
        %s114 = scalar_select %p112, %s113, %s111
        %s115 = sand.u32 %s114, 1
        %s116 = ssub.s32 0, %s115
        %s117 = scalar_select %p112, %s116, %s115
        %p118 = scmp.ne.s32.totalorder %s117, 0
        %p119 = scmp.lt.s32.totalorder %s117, 0
        %p120 = pnand %p119, %p118
        %p121 = pneg %p120
        %s122 = sadd.s32 %s117, 2
        %s123 = scalar_select %p121, %s122, %s117
        %p124 = scmp.eq.s32.totalorder %s111, 0
        // Predicated region
        $region25: #{tpu_custom_call.1} parent=23 // pred_check
          %p125 = pneg %p124
        $region26: #{tpu_custom_call.1} parent=23 // pred_check_branch
          %127 = sbr.rel (%p125) target = $region28
        $region27: #{tpu_custom_call.1} parent=23 // pred_region
          %128 = vst [vmem:[#allocation2 + $0x1] sm:$0x1] 0.0
          %129 = vst [vmem:[#allocation2 + $0xa] sm:$0x1] 0.0
          %s130 = scalar_lea.vmem [#allocation2], 16
          %131 = vst [vmem:[%s130 + $0x1] sm:$0x1] 0.0
          %132 = vst [vmem:[%s130 + $0xa] sm:$0x1] 0.0
          %s133 = scalar_lea.vmem [#allocation2], 32
          %134 = vst [vmem:[%s133 + $0x1] sm:$0x1] 0.0
          %135 = vst [vmem:[%s133 + $0xa] sm:$0x1] 0.0
          %s136 = scalar_lea.vmem [#allocation2], 48
          %137 = vst [vmem:[%s136 + $0x1] sm:$0x1] 0.0
          %138 = vst [vmem:[%s136 + $0xa] sm:$0x1] 0.0
          %s139 = scalar_lea.vmem [#allocation2], 64
          %140 = vst [vmem:[%s139 + $0x1] sm:$0x1] 0.0
          %141 = vst [vmem:[%s139 + $0xa] sm:$0x1] 0.0
          %s142 = scalar_lea.vmem [#allocation2], 80
          %143 = vst [vmem:[%s142 + $0x1] sm:$0x1] 0.0
          %144 = vst [vmem:[%s142 + $0xa] sm:$0x1] 0.0
          %s145 = smul.u32 %s21, 8
          %s146 = ssub.s32 %s145, 1
          %p147 = scmp.gt.s32.totalorder %s146, 0
          %s148 = scalar_select %p147, %s146, 0
          %p149 = scmp.lt.s32.totalorder %s148, 6
          %s150 = scalar_select %p149, %s148, 6
          %s151 = ssub.s32 %s145, %s150
          %s152 = ssub.s32 2, %s151
          %s153 = smul.u32 %s20, 48
          %s154 = sadd.s32 %s150, %s153
          %s155 = smul.addr %s154, 16
          %s156 = scalar_lea.hbm %s0, %s155
          %s157 = smul.u32 %s123, 48
          %s158 = sadd.s32 %s152, %s157
          %s159 = scalar_lea.vmem [#allocation2], %s158
          %s160 = scalar_lea.sflag [#allocation3], %s123
          %s162 = sshll.u32 %s159, 4
          %s163 = int_to_ptr.vmem [resolvable:$true] %s162
          %165 = dma.hbm_to_vmem [thread:$0]  %s156, 480, %s163, %s160, 256, 256, 10
        $region28: #{tpu_custom_call.1} parent=23 // pred_fallthru
          _
        %p166 = scmp.eq.s32.totalorder %s21, 1
        %s167 = sadd.s32 %s20, 1
        %s168 = scalar_select %p166, %s167, %s20
        %s169 = sadd.s32 %s21, 1
        %s170 = scalar_select %p166, 0, %s169
        %s171 = sadd.s32 %s111, 1
        %p172 = scmp.lt.s32.totalorder %s171, 4
        // Predicated region
        $region29: #{tpu_custom_call.1} parent=23 // pred_check
          %p173 = pneg %p172
        $region30: #{tpu_custom_call.1} parent=23 // pred_check_branch
          %175 = sbr.rel (%p173) target = $region32
        $region31: #{tpu_custom_call.1} parent=23 // pred_region
          %s176 = ssub.s32 1, %s123
          %s177 = smul.u32 %s170, 8
          %s178 = ssub.s32 %s177, 1
          %p179 = scmp.gt.s32.totalorder %s178, 0
          %s180 = scalar_select %p179, %s178, 0
          %p181 = scmp.lt.s32.totalorder %s180, 6
          %s182 = scalar_select %p181, %s180, 6
          %s183 = ssub.s32 %s177, %s182
          %s184 = ssub.s32 2, %s183
          %s185 = smul.u32 %s168, 48
          %s186 = sadd.s32 %s182, %s185
          %s187 = smul.addr %s186, 16
          %s188 = scalar_lea.hbm %s0, %s187
          %s189 = smul.u32 %s176, 48
          %s190 = sadd.s32 %s184, %s189
          %s191 = scalar_lea.vmem [#allocation2], %s190
          %s192 = scalar_lea.sflag [#allocation3], %s176
          %s194 = sshll.u32 %s191, 4
          %s195 = int_to_ptr.vmem [resolvable:$true] %s194
          %197 = dma.hbm_to_vmem [thread:$0]  %s188, 480, %s195, %s192, 256, 256, 10
        $region32: #{tpu_custom_call.1} parent=23 // pred_fallthru
          _
        %s198 = smul.u32 %s21, 8
        %s199 = scalar_lea.sflag [#allocation3], %s123
        %s200 = smul.u32 3, 10
        %s201 = smul.u32 %s200, 1
        %s202 = sshll.u32 %s201, 4
        %203 = dma.done %s199, %s202
        %v204 = vlaneseq
        %v205 = vand.u32 %v204, 127
        %v206 = vld [vmem:[%s1] sm:$0x1]
        %vm207 = vcmp.eq.s32.totalorder %v206, 0
        %vm208 = vcmp.eq.s32.totalorder %v206, 15
        %vm209 = vcmp.lt.s32.totalorder %v205, 16
        %vm210 = vcmp.ge.s32.totalorder %v205, 112
        %v211 = vlaneseq
        %v212 = vshrl.u32 %v211, 7
        %v213 = vstv %s198
        %v214 = vadd.s32 %v213, %v212
        %vm215 = vcmp.eq.s32.totalorder %v214, 0
        %vm216 = vcmp.eq.s32.totalorder %v214, 15
        %p217 = scmp.eq.s32.totalorder %s21, 0
        %p218 = por %p217, %p166
        %s219 = smul.u32 %s123, 48
        %s220 = sadd.s32 16, %s219
        %s221 = scalar_lea.vmem [#allocation2], %s220
        %v222 = vld [vmem:[%s221 + $0x2] sm:$0xff]
        %v223 = vld [vmem:[%s221 + $0x3] sm:$0xff]
        %v224 = vld [vmem:[%s221 + $0x1] sm:$0xff]
        // Predicated region
        $region33: #{tpu_custom_call.1} parent=23 // pred_check
          %p225 = pneg %p218
        $region34: #{tpu_custom_call.1} parent=23 // pred_check_branch
          %227 = sbr.rel (%p225) target = $region36
        $region35: #{tpu_custom_call.1} parent=23 // pred_region
          %v228 = vsub.f32 %v223, %v222
          %v229 = vsub.f32 %v222, %v224
          %v230 = vsub.f32 %v223, %v224
          %v231 = vmul.f32 %v230, 0.5
          %v232 = vsel %vm216, 1, 0
          %vm233 = vcmp.eq.s32.totalorder %v232, 1
          %v234 = vsel %vm233, %v229, %v231
          %v235 = vsel %vm215, 1, 0
          %vm236 = vcmp.eq.s32.totalorder %v235, 1
          %v237 = vsel %vm236, %v228, %v234
        $region36: #{tpu_custom_call.1} parent=23 // pred_fallthru
          %v238 = vphi 0, %v237
        %p239 = pneg %p218
        // Predicated region
        $region37: #{tpu_custom_call.1} parent=23 // pred_check
          _
        $region38: #{tpu_custom_call.1} parent=23 // pred_check_branch
          %241 = sbr.rel (%p218) target = $region40
        $region39: #{tpu_custom_call.1} parent=23 // pred_region
          %v242 = vsub.f32 %v223, %v224
          %v243 = vmul.f32 %v242, 0.5
        $region40: #{tpu_custom_call.1} parent=23 // pred_fallthru
          %v244 = vphi %v238, %v243
        %245 = vrot.lane.b32.xlu0 %v222, 112
        %v246 = vpop.permute.xlu0 %245
        %v247 = vsub.f32 %v246, %v222
        %248 = vrot.lane.b32.xlu0 %v247, 16
        %v249 = vpop.permute.xlu0 %248
        %v250 = vadd.f32 %v247, %v249
        %v251 = vmul.f32 %v250, 0.5
        %v252 = vsel %vm210, 1, 0
        %vm253 = vcmp.eq.s32.totalorder %v252, 1
        %v254 = vsel %vm253, %v249, %v251
        %v255 = vsel %vm209, 1, 0
        %vm256 = vcmp.eq.s32.totalorder %v255, 1
        %v257 = vsel %vm256, %v247, %v254
        %258 = vrot.lane.b32.xlu0 %v222, 127
        %v259 = vpop.permute.xlu0 %258
        %v260 = vsub.f32 %v259, %v222
        %261 = vrot.lane.b32.xlu0 %v260, 1
        %v262 = vpop.permute.xlu0 %261
        %v263 = vadd.f32 %v260, %v262
        %v264 = vmul.f32 %v263, 0.5
        %v265 = vsel %vm208, 1, 0
        %v266 = vlaneseq
        %v267 = vshrl.u32 %v266, 7
        %v268 = vsub.s32 0, %v267
        %v269 = vrot.slane %v265, %v268
        %vm270 = vcmp.eq.s32.totalorder %v269, 1
        %v271 = vsel %vm270, %v262, %v264
        %v272 = vsel %vm207, 1, 0
        %v273 = vlaneseq
        %v274 = vshrl.u32 %v273, 7
        %v275 = vsub.s32 0, %v274
        %v276 = vrot.slane %v272, %v275
        %vm277 = vcmp.eq.s32.totalorder %v276, 1
        %v278 = vsel %vm277, %v260, %v271
        %v279 = vadd.f32 %v257, 1.0
        %s280 = sadd.s32 32, %s219
        %s281 = scalar_lea.vmem [#allocation2], %s280
        %v282 = vld [vmem:[%s281 + $0x2] sm:$0xff]
        %v283 = vld [vmem:[%s281 + $0x3] sm:$0xff]
        %v284 = vld [vmem:[%s281 + $0x1] sm:$0xff]
        // Predicated region
        $region41: #{tpu_custom_call.1} parent=23 // pred_check
          %p285 = pneg %p218
        $region42: #{tpu_custom_call.1} parent=23 // pred_check_branch
          %287 = sbr.rel (%p285) target = $region44
        $region43: #{tpu_custom_call.1} parent=23 // pred_region
          %v288 = vsub.f32 %v283, %v282
          %v289 = vsub.f32 %v282, %v284
          %v290 = vsub.f32 %v283, %v284
          %v291 = vmul.f32 %v290, 0.5
          %v292 = vsel %vm216, 1, 0
          %vm293 = vcmp.eq.s32.totalorder %v292, 1
          %v294 = vsel %vm293, %v289, %v291
          %v295 = vsel %vm215, 1, 0
          %vm296 = vcmp.eq.s32.totalorder %v295, 1
          %v297 = vsel %vm296, %v288, %v294
        $region44: #{tpu_custom_call.1} parent=23 // pred_fallthru
          %v298 = vphi 0, %v297
        %p299 = pneg %p218
        // Predicated region
        $region45: #{tpu_custom_call.1} parent=23 // pred_check
          _
        $region46: #{tpu_custom_call.1} parent=23 // pred_check_branch
          %301 = sbr.rel (%p218) target = $region48
        $region47: #{tpu_custom_call.1} parent=23 // pred_region
          %v302 = vsub.f32 %v283, %v284
          %v303 = vmul.f32 %v302, 0.5
        $region48: #{tpu_custom_call.1} parent=23 // pred_fallthru
          %v304 = vphi %v298, %v303
        %305 = vrot.lane.b32.xlu0 %v282, 112
        %v306 = vpop.permute.xlu0 %305
        %v307 = vsub.f32 %v306, %v282
        %308 = vrot.lane.b32.xlu0 %v307, 16
        %v309 = vpop.permute.xlu0 %308
        %v310 = vadd.f32 %v307, %v309
        %v311 = vmul.f32 %v310, 0.5
        %v312 = vsel %vm253, %v309, %v311
        %v313 = vsel %vm256, %v307, %v312
        %314 = vrot.lane.b32.xlu0 %v282, 127
        %v315 = vpop.permute.xlu0 %314
        %v316 = vsub.f32 %v315, %v282
        %317 = vrot.lane.b32.xlu0 %v316, 1
        %v318 = vpop.permute.xlu0 %317
        %v319 = vadd.f32 %v316, %v318
        %v320 = vmul.f32 %v319, 0.5
        %v321 = vsel %vm270, %v318, %v320
        %v322 = vsel %vm277, %v316, %v321
        %v323 = vadd.f32 %v322, 1.0
        %v324 = vmul.f32 %v279, %v323
        %v325 = vmul.f32 %v278, %v313
        %v326 = vsub.f32 %v324, %v325
        %v327 = vmul.f32 %v244, %v323
        %v328 = vmul.f32 %v278, %v304
        %v329 = vsub.f32 %v327, %v328
        %v330 = vmul.f32 %v244, %v313
        %v331 = vmul.f32 %v279, %v304
        %v332 = vsub.f32 %v330, %v331
        %s333 = scalar_lea.vmem [#allocation2], %s219
        %v334 = vld [vmem:[%s333 + $0x2] sm:$0xff]
        %v335 = vld [vmem:[%s333 + $0x3] sm:$0xff]
        %v336 = vld [vmem:[%s333 + $0x1] sm:$0xff]
        // Predicated region
        $region49: #{tpu_custom_call.1} parent=23 // pred_check
          %p337 = pneg %p218
        $region50: #{tpu_custom_call.1} parent=23 // pred_check_branch
          %339 = sbr.rel (%p337) target = $region52
        $region51: #{tpu_custom_call.1} parent=23 // pred_region
          %v340 = vsub.f32 %v335, %v334
          %v341 = vsub.f32 %v334, %v336
          %v342 = vsub.f32 %v335, %v336
          %v343 = vmul.f32 %v342, 0.5
          %v344 = vsel %vm216, 1, 0
          %vm345 = vcmp.eq.s32.totalorder %v344, 1
          %v346 = vsel %vm345, %v341, %v343
          %v347 = vsel %vm215, 1, 0
          %vm348 = vcmp.eq.s32.totalorder %v347, 1
          %v349 = vsel %vm348, %v340, %v346
        $region52: #{tpu_custom_call.1} parent=23 // pred_fallthru
          %v350 = vphi 0, %v349
        %p351 = pneg %p218
        // Predicated region
        $region53: #{tpu_custom_call.1} parent=23 // pred_check
          _
        $region54: #{tpu_custom_call.1} parent=23 // pred_check_branch
          %353 = sbr.rel (%p218) target = $region56
        $region55: #{tpu_custom_call.1} parent=23 // pred_region
          %v354 = vsub.f32 %v335, %v336
          %v355 = vmul.f32 %v354, 0.5
        $region56: #{tpu_custom_call.1} parent=23 // pred_fallthru
          %v356 = vphi %v350, %v355
        %357 = vrot.lane.b32.xlu0 %v334, 112
        %v358 = vpop.permute.xlu0 %357
        %v359 = vsub.f32 %v358, %v334
        %360 = vrot.lane.b32.xlu0 %v359, 16
        %v361 = vpop.permute.xlu0 %360
        %v362 = vadd.f32 %v359, %v361
        %v363 = vmul.f32 %v362, 0.5
        %v364 = vsel %vm253, %v361, %v363
        %v365 = vsel %vm256, %v359, %v364
        %366 = vrot.lane.b32.xlu0 %v334, 127
        %v367 = vpop.permute.xlu0 %366
        %v368 = vsub.f32 %v367, %v334
        %369 = vrot.lane.b32.xlu0 %v368, 1
        %v370 = vpop.permute.xlu0 %369
        %v371 = vadd.f32 %v368, %v370
        %v372 = vmul.f32 %v371, 0.5
        %v373 = vsel %vm270, %v370, %v372
        %v374 = vsel %vm277, %v368, %v373
        %v375 = vadd.f32 %v356, 1.0
        %v376 = vmul.f32 %v375, %v326
        %v377 = vmul.f32 %v365, %v329
        %v378 = vsub.f32 %v376, %v377
        %v379 = vmul.f32 %v374, %v332
        %v380 = vadd.f32 %v378, %v379
        %v381 = vlog2.pop %v380
        %v382 = vmul.f32 %v381, 0.6931472
        %v383 = vmul.f32 %v382, %v382
        %384 = vst [vmem:[%s109] sm:$0xff] %v383
        %s385 = sand.u32 %s59, 1
        %s386 = scalar_lea.sflag [#allocation5], %s385
        %s387 = sand.u32 %s59, 1
        %s388 = smul.addr %s387, 8
        %s389 = scalar_lea.vmem [#allocation4], %s388
        // Predicated region
        $region57: #{tpu_custom_call.1} parent=23 // pred_check
          %p390 = pneg %p69
        $region58: #{tpu_custom_call.1} parent=23 // pred_check_branch
          %392 = sbr.rel (%p390) target = $region60
        $region59: #{tpu_custom_call.1} parent=23 // pred_region
          %s394 = ssub.s32 128, 128
          %395 = vsyncadd %s386, %s394
          %s396 = smul.addr %s20, 2
          %s397 = sadd.s32 %s21, %s396
          %s398 = smul.addr %s397, 128
          %s399 = scalar_lea.hbm %s2, %s398
          %s401 = sshll.u32 %s389, 4
          %s402 = int_to_ptr.vmem [resolvable:$true] %s401
          %404 = dma.vmem_to_hbm [thread:$0]  %s402, 128, %s399, %s386
        $region60: #{tpu_custom_call.1} parent=23 // pred_fallthru
          _
      $region24: #{tpu_custom_call.1} parent=5 // pred_fallthru
        _
      %p405 = scmp.le.s32.totalorder 2, %s11
      // Predicated region
      $region61: #{tpu_custom_call.1} parent=5 // pred_check
        %p406 = pneg %p405
      $region62: #{tpu_custom_call.1} parent=5 // pred_check_branch
        %408 = sbr.rel (%p406) target = $region64
      $region63: #{tpu_custom_call.1} parent=5 // pred_region
        %s409 = ssub.s32 %s11, 2
        // Predicated region
        $region65: #{tpu_custom_call.1} parent=63 // pred_check
          %p410 = pneg %p75
        $region66: #{tpu_custom_call.1} parent=63 // pred_check_branch
          %412 = sbr.rel (%p410) target = $region68
        $region67: #{tpu_custom_call.1} parent=63 // pred_region
          %s413 = sand.u32 %s60, 1
          %s414 = scalar_lea.sflag [#allocation5], %s413
          %s415 = sand.u32 %s60, 1
          %s416 = smul.addr %s415, 8
          %s417 = scalar_lea.vmem [#allocation4], %s416
          %418 = dma.done %s414, 128
        $region68: #{tpu_custom_call.1} parent=63 // pred_fallthru
          _
      $region64: #{tpu_custom_call.1} parent=5 // pred_fallthru
        _
    $region6: #{tpu_custom_call.1} parent=1 // loop_footer
      %s15 = sadd.s32 1, %s11
    $region7: #{tpu_custom_call.1} parent=1 // loop_footer_branch
      %10 = sbr.rel target = $region3
    $region8: #{tpu_custom_call.1} parent=1 // loop_exit
      _
    %419 = vsyncpa [#allocation5], 1
    %s420 = scalar_lea.sflag [#allocation5], 1
    %421 = vsyncpa %s420, 1
  %422 = vsyncmov [#allocation3]
  %s423 = vpop.sfrf %422
  %p424 = scmp.eq.s32.totalorder %s423, 0
  %p425 = pneg %p424
  %427 = shalt.err (%p425)
  %s428 = scalar_lea.sflag [#allocation3], 1
  %429 = vsyncmov %s428
  %s430 = vpop.sfrf %429
  %p431 = scmp.eq.s32.totalorder %s430, 0
  %p432 = pneg %p431
  %434 = shalt.err (%p432)

</llo_original>
